<compile_context>
chip_gen: v7x
topology: tpu7x:2x2x1
jax: 0.10.0
libtpu: 0.0.40
codegen_flags: <defaults>
</compile_context>

<pallas_src>
import numpy as np
import jax
import jax.numpy as jnp
from jax.experimental import pallas as pl
from jax.experimental.pallas import tpu as pltpu


# ----------------------------- small helpers --------------------------------

def _round_up(x, m):
    return ((x + m - 1) // m) * m


def _cdiv(a, b):
    return -(-a // b)


def _vmem_budget_bytes():
    try:
        cap = int(pltpu.get_tpu_info().vmem_capacity_bytes)
    except Exception:
        cap = 64 * 1024 * 1024  # conservative (v7x-sized) default if the query is unavailable
    # ~54 MiB usable on 64 MiB parts (v7x), ~107 MiB on 128 MiB parts (v5e/v6e); the slack
    # leaves room for Mosaic internal scratch / semaphores (never request full physical VMEM).
    return int(cap * 0.84)


def _pick_tm(M, cap=512):
    """Largest-reasonable M tile that minimizes padding rows (multiple of 8)."""
    if M <= cap:
        return _round_up(M, 8)
    best_tm, best_pad = None, None
    for cand in (512, 448, 384, 320, 256, 192, 128):
        if cand > cap:
            continue
        pad = _round_up(M, cand) - M
        if best_pad is None or pad < best_pad:
            best_tm, best_pad = cand, pad
    return best_tm


def _pick_tn(e, cap=512):
    """Per-N-tile chunk width (multiple of 128) minimizing padded columns Np."""
    if e <= cap:
        # NOTE: for e < 128 the chunk is still lane-padded to 128 (87.5% MXU-column waste at
        # e=16); batching several small heads into one 128-lane group is a possible follow-up.
        return _round_up(e, 128)
    best_tn, best_np = None, None
    for cand in (512, 384, 256, 128):
        n = _cdiv(e, cand) * cand
        if best_np is None or n < best_np:
            best_tn, best_np = cand, n
    return best_tn


def _pack_weight(weight, *, e, tn, num_n, K_pad, dtype):
    """[4e, K] PyTorch weight -> [K_pad, num_n * 4*tn]: per N tile the 4 chunks are
    contiguous and each chunk starts on a 128-lane boundary."""
    four_e, K = weight.shape
    Np = num_n * tn
    wt = jnp.transpose(weight).astype(dtype)                 # [K, 4e]
    w4 = wt.reshape(K, 4, e)
    w4 = jnp.pad(w4, ((0, K_pad - K), (0, 0), (0, Np - e)))  # zero-pad K rows / e columns
    w4 = w4.reshape(K_pad, 4, num_n, tn).transpose(0, 2, 1, 3)
    return w4.reshape(K_pad, num_n * 4 * tn)


# ------------------------------- kernels -------------------------------------

def _complex_linear_kernel_single(x_ref, w_ref, o_ref):
    # Single K step: no accumulator scratch, no zero-init round-trip.
    # x_ref (tm, K); w_ref (K, 4*tn); o_ref (tm, 2*tn)
    tn = o_ref.shape[-1] // 2
    y = jnp.dot(x_ref[...], w_ref[...], preferred_element_type=jnp.float32)
    ac = y[:, 0 * tn:1 * tn] * y[:, 2 * tn:3 * tn]
    bd = y[:, 1 * tn:2 * tn] * y[:, 3 * tn:4 * tn]
    o_ref[:, :tn] = (ac - bd).astype(o_ref.dtype)            # real
    o_ref[:, tn:] = (ac + bd).astype(o_ref.dtype)            # "imag" (verbatim reference math)


def _complex_linear_kernel_acc(x_ref, w_ref, o_ref, acc_ref):
    # K-tiled: x_ref (tm, tk); w_ref (tk, 4*tn); o_ref (tm, 2*tn); acc_ref (tm, 4*tn) f32
    k = pl.program_id(2)

    @pl.when(k == 0)
    def _init():
        acc_ref[...] = jnp.zeros_like(acc_ref)

    acc_ref[...] += jnp.dot(x_ref[...], w_ref[...], preferred_element_type=jnp.float32)

    @pl.when(k == pl.num_programs(2) - 1)
    def _finalize():
        tn = o_ref.shape[-1] // 2
        # Slice straight from the ref (keeps vreg live ranges short; epilogue is VPU filler).
        h0 = acc_ref[:, 0 * tn:1 * tn]
        h1 = acc_ref[:, 1 * tn:2 * tn]
        h2 = acc_ref[:, 2 * tn:3 * tn]
        h3 = acc_ref[:, 3 * tn:4 * tn]
        ac = h0 * h2
        bd = h1 * h3
        o_ref[:, :tn] = (ac - bd).astype(o_ref.dtype)
        o_ref[:, tn:] = (ac + bd).astype(o_ref.dtype)


# ------------------------------ public API ------------------------------------

class ComplexLinearPallas:
    """Caches the tiling plan and the packed/cast weight; call with x of shape [..., K]."""

    def __init__(self, weight, *, compute_dtype=None, k_tile=None):
        four_e, K = weight.shape
        if four_e % 4 != 0:
            raise ValueError("out_features must be a multiple of 2")
        self.e = four_e // 4
        self.out_features = 2 * self.e
        self.K = int(K)
        self.cdt = jnp.dtype(compute_dtype) if compute_dtype is not None else jnp.dtype(weight.dtype)
        self.cdt_size = self.cdt.itemsize
        self.budget = _vmem_budget_bytes()

        self.tn = _pick_tn(self.e)
        self.num_n = _cdiv(self.e, self.tn)
        self.Np = self.num_n * self.tn

        tm_max = 512
        out_size = 4  # worst-case (f32) output blocks for the budget estimate
        if k_tile is not None:
            if k_tile % 128 != 0:
                raise ValueError("k_tile must be a multiple of 128")
            self.mode, self.tk = "tiled", int(k_tile)
        else:
            need_single = (2 * (tm_max * self.K + self.K * 4 * self.tn) * self.cdt_size
                           + 2 * tm_max * 2 * self.tn * out_size)
            if need_single <= self.budget - (4 << 20):
                self.mode, self.tk = "single", self.K
            else:
                self.mode = "tiled"
                best = None
                for cand in (1024, 512, 256):
                    need = (2 * (tm_max * cand + cand * 4 * self.tn) * self.cdt_size
                            + 2 * tm_max * 2 * self.tn * out_size
                            + tm_max * 4 * self.tn * 4)
                    if need > self.budget - (4 << 20):
                        continue
                    key = (_round_up(self.K, cand), -cand)   # minimize K padding, prefer big tk
                    if best is None or key < best[0]:
                        best = (key, cand)
                self.tk = best[1] if best is not None else 128

        if self.mode == "single":
            self.K_pad, self.num_k = self.K, 1
        else:
            self.K_pad = _round_up(self.K, self.tk)
            self.num_k = self.K_pad // self.tk

        # Weight repack happens exactly once (hoisted out of the per-call hot path).
        self.w_packed = _pack_weight(weight, e=self.e, tn=self.tn, num_n=self.num_n,
                                     K_pad=self.K_pad, dtype=self.cdt)

    def __call__(self, x):
        *lead, K = x.shape
        if K != self.K:
            raise ValueError(f"expected last dim {self.K}, got {K}")
        out_dtype = x.dtype
        out_size = jnp.dtype(out_dtype).itemsize
        M = int(np.prod(lead)) if lead else 1

        tm = _pick_tm(M)
        # v7x has 2 TensorCores: ensure >= 2 parallel grid steps when there is enough work.
        if self.num_n == 1 and M > 256 and _cdiv(M, tm) == 1:
            tm = _round_up(_cdiv(M, 2), 8)
        M_pad = _round_up(M, tm)
        num_m = M_pad // tm

        x2 = x.reshape(M, K)
        if M_pad != M or self.K_pad != K:
            x2 = jnp.pad(x2, ((0, M_pad - M), (0, self.K_pad - K)))
        x2 = x2.astype(self.cdt)

        tn, num_n, Np = self.tn, self.num_n, self.Np
        # (Tunable once profiled DMA-exposed: pipeline_mode=pl.Buffered(3) on streamed specs.)
        if self.mode == "single":
            kernel = _complex_linear_kernel_single
            scratch = []
            dims = ("parallel", "parallel")
            x_bytes = M_pad * self.K_pad * self.cdt_size
            w_bytes = self.K_pad * num_n * 4 * tn * self.cdt_size
            if (num_n - 1) * x_bytes <= (num_m - 1) * w_bytes:
                # Weight-resident ordering: N outer, M inner -> weight DMA'd once per N tile.
                grid = (num_n, num_m)
                x_map = lambda j, i: (i, 0)
                w_map = lambda j, i: (0, j)
                o_map = lambda j, i: (i, j)
            else:
                grid = (num_m, num_n)
                x_map = lambda i, j: (i, 0)
                w_map = lambda i, j: (0, j)
                o_map = lambda i, j: (i, j)
            in_specs = [pl.BlockSpec((tm, self.K_pad), x_map),
                        pl.BlockSpec((self.K_pad, 4 * tn), w_map)]
            out_specs = pl.BlockSpec((tm, 2 * tn), o_map)
            need = (2 * (tm * self.K_pad + self.K_pad * 4 * tn) * self.cdt_size
                    + 2 * tm * 2 * tn * out_size)
        else:
            kernel = _complex_linear_kernel_acc
            scratch = [pltpu.VMEM((tm, 4 * tn), jnp.float32)]
            dims = ("parallel", "parallel", "arbitrary")
            grid = (num_m, num_n, self.num_k)
            in_specs = [pl.BlockSpec((tm, self.tk), lambda i, j, k: (i, k)),
                        pl.BlockSpec((self.tk, 4 * tn), lambda i, j, k: (k, j))]
            out_specs = pl.BlockSpec((tm, 2 * tn), lambda i, j, k: (i, j))
            need = (2 * (tm * self.tk + self.tk * 4 * tn) * self.cdt_size
                    + 2 * tm * 2 * tn * out_size + tm * 4 * tn * 4)

        vmem_limit = int(min(self.budget, max(32 << 20, 2 * need)))
        cost = pl.CostEstimate(
            flops=int(2 * M_pad * self.K_pad * 4 * Np + 4 * M_pad * Np),
            transcendentals=0,
            bytes_accessed=int((M_pad * self.K_pad + self.K_pad * 4 * Np) * self.cdt_size
                               + M_pad * 2 * Np * out_size),
        )

        out_p = pl.pallas_call(
            kernel,
            out_shape=jax.ShapeDtypeStruct((M_pad, num_n * 2 * tn), out_dtype),
            grid_spec=pltpu.PrefetchScalarGridSpec(
                num_scalar_prefetch=0,
                grid=grid,
                in_specs=in_specs,
                out_specs=out_specs,
                scratch_shapes=scratch,
            ),
            compiler_params=pltpu.CompilerParams(
                dimension_semantics=dims,
                vmem_limit_bytes=vmem_limit,
            ),
            cost_estimate=cost,
        )(x2, self.w_packed)

        # Unpack the per-tile [real_j | imag_j] layout back to [..., real | imag].
        if num_n == 1:
            out3 = out_p[:M].reshape(M, 2, Np)                      # free reshape when no pad
        else:
            out3 = (out_p[:M].reshape(M, num_n, 2, tn)
                    .transpose(0, 2, 1, 3).reshape(M, 2, Np))
        if Np != self.e:
            out3 = out3[:, :, :self.e]
        return out3.reshape(*lead, self.out_features)


def complex_linear(x, weight, *, compute_dtype=None):
    """One-shot functional wrapper (re-packs the weight each call; prefer
    ComplexLinearPallas for repeated calls)."""
    return ComplexLinearPallas(weight, compute_dtype=compute_dtype)(x)


def complex_linear_reference(x, weight):
    """Pure-JAX reference mirroring the PyTorch forward exactly."""
    y = jnp.einsum("...k,nk->...n", x, weight)                 # [..., 4e]
    e = weight.shape[0] // 4
    y = y.reshape(*y.shape[:-1], 4, e)                         # '... (c e) -> ... c e', c=4
    c1, c2 = y[..., :2, :], y[..., 2:, :]
    cc = c2.at[..., 1, :].multiply(-1.0)                       # BotanCC
    ac_bd = (c1 * cc).sum(-2)
    adbc = (c1 * c2).sum(-2)                                   # y[..., ::1, :] is a no-op slice
    out = jnp.stack([ac_bd, adbc], axis=-2)                    # [..., 2, e]
    return out.reshape(*out.shape[:-2], 2 * e)


if __name__ == "__main__":
    key = jax.random.PRNGKey(0)
    kx, kw, kx2, kw2 = jax.random.split(key, 4)

    # --- Test 1: module-default small shapes, exact (f32) single-K-step path ------------
    batch, seq, in_features, out_features = 2, 8, 32, 32
    x = jax.random.normal(kx, (batch, seq, in_features), dtype=jnp.float32)
    bound = 1.0 / np.sqrt(in_features)
    weight = jax.random.uniform(kw, (out_features * 2, in_features), dtype=jnp.float32,
                                minval=-bound, maxval=bound)

    mod = ComplexLinearPallas(weight)                 # packs / caches the weight once
    out = jax.block_until_ready(mod(x))
    ref = complex_linear_reference(x, weight)
    np.testing.assert_allclose(np.asarray(out), np.asarray(ref), rtol=1e-5, atol=1e-5)
    assert out.shape == (batch, seq, out_features)

    # --- Test 2: K-tiled accumulator kernel + multi-N-tile unpack (forced small tiles) --
    in2, out2f = 256, 1536                            # e=768 -> tn=384, num_n=2; 2 K steps
    x_b = jax.random.normal(kx2, (batch, seq, in2), dtype=jnp.float32)
    bound2 = 1.0 / np.sqrt(in2)
    w_b = jax.random.uniform(kw2, (out2f * 2, in2), dtype=jnp.float32,
                             minval=-bound2, maxval=bound2)
    mod_b = ComplexLinearPallas(w_b, k_tile=128)      # force the K-reduction kernel
    out_b = jax.block_until_ready(mod_b(x_b))
    ref_b = complex_linear_reference(x_b, w_b)
    np.testing.assert_allclose(np.asarray(out_b), np.asarray(ref_b), rtol=1e-4, atol=1e-4)

    # --- Test 3: bf16 compute perf path (f32 accumulation), loose tolerance demo --------
    mod_bf16 = ComplexLinearPallas(weight, compute_dtype=jnp.bfloat16)
    out_bf16 = jax.block_until_ready(mod_bf16(x))
    np.testing.assert_allclose(np.asarray(out_bf16), np.asarray(ref), rtol=2e-1, atol=2e-1)

    print("KERNEL_OK")
</pallas_src>

<mosaic_0001>
module attributes {stable_mosaic.version = 11 : i64} {
  func.func @_complex_linear_kernel_single(%arg0: i32, %arg1: i32, %arg2: memref<16x32xf32, #tpu.memory_space<vmem>>, %arg3: memref<32x512xf32, #tpu.memory_space<vmem>>, %arg4: memref<16x256xf32, #tpu.memory_space<vmem>>) attributes {dimension_semantics = [#tpu.dimension_semantics<parallel>, #tpu.dimension_semantics<parallel>], iteration_bounds = array<i64: 1, 1>, scalar_prefetch = 0 : i64, scratch_operands = 0 : i64, tpu.core_type = #tpu.core_type<tc>, window_params = [{transform_indices = @transform_0, window_bounds = array<i64: 16, 32>}, {transform_indices = @transform_1, window_bounds = array<i64: 32, 512>}, {transform_indices = @transform_2, window_bounds = array<i64: 16, 256>}]} {
    %c0 = arith.constant 0 : index
    %c0_0 = arith.constant 0 : index
    %0 = vector.load %arg2[%c0, %c0_0] : memref<16x32xf32, #tpu.memory_space<vmem>>, vector<16x32xf32>
    %c0_1 = arith.constant 0 : index
    %c0_2 = arith.constant 0 : index
    %1 = vector.load %arg3[%c0_1, %c0_2] : memref<32x512xf32, #tpu.memory_space<vmem>>, vector<32x512xf32>
    %cst = arith.constant dense<0.000000e+00> : vector<16x512xf32>
    %2 = tpu.matmul %0, %1, %cst {dimension_numbers = #tpu.dot_dimension_numbers<[1], [0], [0], [1], [0, 0, 1, 1], [], []>} : vector<16x32xf32>, vector<32x512xf32>, vector<16x512xf32> -> vector<16x512xf32>
    %3 = vector.extract_strided_slice %2 {offsets = [0, 0], sizes = [16, 128], strides = [1, 1]} : vector<16x512xf32> to vector<16x128xf32>
    %4 = vector.extract_strided_slice %2 {offsets = [0, 256], sizes = [16, 128], strides = [1, 1]} : vector<16x512xf32> to vector<16x128xf32>
    %5 = arith.mulf %3, %4 : vector<16x128xf32>
    %6 = vector.extract_strided_slice %2 {offsets = [0, 128], sizes = [16, 128], strides = [1, 1]} : vector<16x512xf32> to vector<16x128xf32>
    %7 = vector.extract_strided_slice %2 {offsets = [0, 384], sizes = [16, 128], strides = [1, 1]} : vector<16x512xf32> to vector<16x128xf32>
    %8 = arith.mulf %6, %7 : vector<16x128xf32>
    %9 = arith.subf %5, %8 : vector<16x128xf32>
    %c0_3 = arith.constant 0 : index
    %c0_4 = arith.constant 0 : index
    %10 = vector.load %arg4[%c0_3, %c0_4] : memref<16x256xf32, #tpu.memory_space<vmem>>, vector<16x128xf32>
    tpu.vector_store %arg4[%c0_3, %c0_4], %9 {strides = array<i32>} : memref<16x256xf32, #tpu.memory_space<vmem>>, vector<16x128xf32>,
    %11 = arith.addf %5, %8 : vector<16x128xf32>
    %c0_5 = arith.constant 0 : index
    %c128 = arith.constant 128 : index
    %12 = vector.load %arg4[%c0_5, %c128] : memref<16x256xf32, #tpu.memory_space<vmem>>, vector<16x128xf32>
    tpu.vector_store %arg4[%c0_5, %c128], %11 {strides = array<i32>} : memref<16x256xf32, #tpu.memory_space<vmem>>, vector<16x128xf32>,
    return
  }
  func.func @transform_0(%arg0: i32, %arg1: i32) -> (i32, i32) {
    %c0_i32 = arith.constant 0 : i32
    %c0_i32_0 = arith.constant 0 : i32
    return %arg1, %c0_i32 : i32, i32
  }
  func.func @transform_1(%arg0: i32, %arg1: i32) -> (i32, i32) {
    %c0_i32 = arith.constant 0 : i32
    %c0_i32_0 = arith.constant 0 : i32
    return %c0_i32, %arg0 : i32, i32
  }
  func.func @transform_2(%arg0: i32, %arg1: i32) -> (i32, i32) {
    %c0_i32 = arith.constant 0 : i32
    return %arg1, %arg0 : i32, i32
  }
}

</mosaic_0001>

<llo_original>
// kernel: tpu_custom_call.1
$region0: #{tpu_custom_call.1}
  #allocation0 [shape = 'u32[]', space=smem, size = 0x4, offset = 0x4, fixed_abs, tag = 'smem constant byte address 0x4 - core index']
  #allocation1 [shape = 'u32[144,128]{1,0:T(1,128)}', space=vmem, size = 0x12000, scoped, tag = 'internal scratch']
  %s0 = inlined_call_operand.hbm [shape: f32[16,32], index: 0, kind: input, shape index: {}]
  %s1 = inlined_call_operand.hbm [shape: f32[32,512], index: 1, kind: input, shape index: {}]
  %s2 = inlined_call_operand.hbm [shape: f32[16,256], index: 2, kind: output, shape index: {}]
  %s3 = sld [smem:[#allocation0]]
  $region26: #{tpu_custom_call.1} parent=0
    _
  %s5 = ssub.s32 1, %s3
  %s6 = scalar_select 0, %s5, %s3
  $region1: #{tpu_custom_call.1} parent=0
    #allocation2 [shape = 'u8[8192]{0}', space=vmem, size = 0x2000, scoped, tag = 'input window, operand 0, single buffered']
    #allocation3 [shape = 's32[1]{0}', space=sflag, size = 0x4, scoped, tag = 'scoped memory for tpu_custom_call.1']
    #allocation4 [shape = 's32[1]{0}', space=sflag, size = 0x4, scoped, tag = 'scoped memory for tpu_custom_call.1']
    #allocation5 [shape = 'u8[65536]{0}', space=vmem, size = 0x10000, scoped, tag = 'input window, operand 1, single buffered']
    #allocation6 [shape = 's32[1]{0}', space=sflag, size = 0x4, scoped, tag = 'scoped memory for tpu_custom_call.1']
    #allocation7 [shape = 'u8[16384]{0}', space=vmem, size = 0x4000, scoped, tag = 'output window, operand 0, single buffered']
    %7 = vsyncpa [#allocation3], 0
    %8 = vsyncpa [#allocation6], 0
    %9 = vsyncpa [#allocation4], 0
    // Predicated region
    $region2: #{tpu_custom_call.1} parent=1 // pred_check
      _
    $region3: #{tpu_custom_call.1} parent=1 // pred_check_branch
      %11 = sbr.rel (0) target = $region5
    $region4: #{tpu_custom_call.1} parent=1 // pred_region
      %s13 = ssub.s32 256, 256
      %14 = vsyncadd [#allocation3], %s13
      %s15 = sshll.u32 [#allocation2], 4
      %s16 = int_to_ptr.vmem [resolvable:$true] %s15
      %21 = dma.hbm_to_vmem [thread:$0]  %s0, 256, %s16, [#allocation3], 128, 128, 8
    $region5: #{tpu_custom_call.1} parent=1 // pred_fallthru
      _
    // Predicated region
    $region6: #{tpu_custom_call.1} parent=1 // pred_check
      _
    $region7: #{tpu_custom_call.1} parent=1 // pred_check_branch
      %23 = sbr.rel (0) target = $region9
    $region8: #{tpu_custom_call.1} parent=1 // pred_region
      %s25 = ssub.s32 2048, 2048
      %26 = vsyncadd [#allocation6], %s25
      %s27 = sshll.u32 [#allocation5], 4
      %s28 = int_to_ptr.vmem [resolvable:$true] %s27
      %33 = dma.hbm_to_vmem [thread:$0]  %s1, 2048, %s28, [#allocation6], 512, 512, 32
    $region9: #{tpu_custom_call.1} parent=1 // pred_fallthru
      _
    // Predicated region
    $region10: #{tpu_custom_call.1} parent=1 // pred_check
      _
    $region11: #{tpu_custom_call.1} parent=1 // pred_check_branch
      %35 = sbr.rel (0) target = $region13
    $region12: #{tpu_custom_call.1} parent=1 // pred_region
      %36 = dma.done [#allocation3], 256
    $region13: #{tpu_custom_call.1} parent=1 // pred_fallthru
      _
    // Predicated region
    $region14: #{tpu_custom_call.1} parent=1 // pred_check
      _
    $region15: #{tpu_custom_call.1} parent=1 // pred_check_branch
      %38 = sbr.rel (0) target = $region17
    $region16: #{tpu_custom_call.1} parent=1 // pred_region
      %39 = dma.done [#allocation6], 2048
    $region17: #{tpu_custom_call.1} parent=1 // pred_fallthru
      _
    %v40 = vld [vmem:[#allocation2] sm:$0xff]
    %v41 = vld [vmem:[#allocation2 + $0x8] sm:$0xff]
    %v42 = vld [vmem:[#allocation5] sm:$0xff]
    %v43 = vld [vmem:[#allocation5 + $0x8] sm:$0xff]
    %v44 = vld [vmem:[#allocation5 + $0x10] sm:$0xff]
    %v45 = vld [vmem:[#allocation5 + $0x18] sm:$0xff]
    %v46 = vld [vmem:[#allocation5 + $0x20] sm:$0xff]
    %v47 = vld [vmem:[#allocation5 + $0x28] sm:$0xff]
    %v48 = vld [vmem:[#allocation5 + $0x30] sm:$0xff]
    %v49 = vld [vmem:[#allocation5 + $0x38] sm:$0xff]
    %v50 = vld [vmem:[#allocation5 + $0x40] sm:$0xff]
    %v51 = vld [vmem:[#allocation5 + $0x48] sm:$0xff]
    %v52 = vld [vmem:[#allocation5 + $0x50] sm:$0xff]
    %v53 = vld [vmem:[#allocation5 + $0x58] sm:$0xff]
    %v54 = vld [vmem:[#allocation5 + $0x60] sm:$0xff]
    %v55 = vld [vmem:[#allocation5 + $0x68] sm:$0xff]
    %v56 = vld [vmem:[#allocation5 + $0x70] sm:$0xff]
    %v57 = vld [vmem:[#allocation5 + $0x78] sm:$0xff]
    %vm58 = vcmask 261120
    %v60 = vsel %vm58, %v40, 0
    %v63 = vsel %vm58, %v41, 0
    %65 = vmatprep.subr.mxu0 %v43
    %66 = vmatpush1.msra.mxu0 %v42
    %67 = vmatprep.subr.mxu0 %v47
    %68 = vmatpush1.msra.mxu0 %v46
    %69 = vmatprep.subr.mxu0 %v51
    %70 = vmatpush1.msra.mxu0 %v50
    %71 = vmatprep.subr.mxu0 %v55
    %72 = vmatpush1.msra.mxu0 %v54
    %73 = vmatprep.subr.mxu0 0.0
    %74 = vmatpush1.msra.mxu0 0.0
    %75 = vmatprep.subr.mxu0 0.0
    %76 = vmatpush1.msra.mxu0 0.0
    %77 = vmatprep.subr.mxu0 0.0
    %78 = vmatpush1.msra.mxu0 0.0
    %79 = vmatprep.subr.mxu0 0.0
    %80 = vmatpush1.msra.mxu0 0.0
    %81 = vmatprep.subr.mxu0 0.0
    %82 = vmatpush1.msra.mxu0 0.0
    %83 = vmatprep.subr.mxu0 0.0
    %84 = vmatpush1.msra.mxu0 0.0
    %85 = vmatprep.subr.mxu0 0.0
    %86 = vmatpush1.msra.mxu0 0.0
    %87 = vmatprep.subr.mxu0 0.0
    %88 = vmatpush1.msra.mxu0 0.0
    %89 = vmatprep.subr.mxu0 0.0
    %90 = vmatpush1.msra.mxu0 0.0
    %91 = vmatprep.subr.mxu0 0.0
    %92 = vmatpush1.msra.mxu0 0.0
    %93 = vmatprep.subr.mxu0 0.0
    %94 = vmatpush1.msra.mxu0 0.0
    %95 = vmatprep.subr.mxu0 0.0
    %96 = vmatpush1.msra.mxu0 0.0
    %97 = vmatprep.subr.mxu0 0.0
    %98 = vmatpush1.msra.mxu0 0.0
    %99 = vmatprep.subr.mxu0 0.0
    %100 = vmatpush1.msra.mxu0 0.0
    %101 = vmatprep.subr.mxu0 0.0
    %102 = vmatpush1.msra.mxu0 0.0
    %103 = vmatprep.subr.mxu0 0.0
    %104 = vmatpush1.msra.mxu0 0.0
    %105 = vmatprep.subr.mxu0 0.0
    %106 = vmatpush1.msra.mxu0 0.0
    %107 = vmatprep.subr.mxu0 0.0
    %108 = vmatpush1.msra.mxu0 0.0
    %109 = vmatprep.subr.mxu0 0.0
    %110 = vmatpush1.msra.mxu0 0.0
    %111 = vmatprep.subr.mxu0 0.0
    %112 = vmatpush1.msra.mxu0 0.0
    %113 = vmatprep.subr.mxu0 0.0
    %114 = vmatpush1.msra.mxu0 0.0
    %115 = vmatprep.subr.mxu0 0.0
    %116 = vmatpush1.msra.mxu0 0.0
    %117 = vmatprep.subr.mxu0 0.0
    %118 = vmatpush1.msra.mxu0 0.0
    %119 = vmatprep.subr.mxu0 0.0
    %120 = vmatpush1.msra.mxu0 0.0
    %121 = vmatprep.subr.mxu0 0.0
    %122 = vmatpush1.msra.mxu0 0.0
    %123 = vmatprep.subr.mxu0 0.0
    %124 = vmatpush1.msra.mxu0 0.0
    %125 = vmatprep.subr.mxu0 0.0
    %126 = vmatpush1.msra.mxu0 0.0
    %127 = vmatprep.subr.mxu0 0.0
    %128 = vmatpush1.msra.mxu0 0.0
    %129 = vmatprep.mubr.f32.mxu0 0.0
    %130 = vmatmul.mubr.f32.gmra.mrb[0].mxu0 %v60
    %v131 = vpop.f32.mrb[0].mxu0
    %v132 = vadd.f32 0.0, %v131
    %v133 = vpop.f32.mrb[0].mxu0
    %v134 = vadd.f32 0.0, %v133
    %135 = vmatprep.mubr.f32.mxu0 0.0
    %136 = vmatmul.mubr.f32.gmra.mrb[0].mxu0 %v63
    %v137 = vpop.f32.mrb[0].mxu0
    %v138 = vadd.f32 0.0, %v137
    %v139 = vpop.f32.mrb[0].mxu0
    %v140 = vadd.f32 0.0, %v139
    %141 = vdwg.mxu0
    %142 = vmatprep.subr.mxu0 %v45
    %143 = vmatpush1.msra.mxu0 %v44
    %144 = vmatprep.subr.mxu0 %v49
    %145 = vmatpush1.msra.mxu0 %v48
    %146 = vmatprep.subr.mxu0 %v53
    %147 = vmatpush1.msra.mxu0 %v52
    %148 = vmatprep.subr.mxu0 %v57
    %149 = vmatpush1.msra.mxu0 %v56
    %150 = vmatprep.subr.mxu0 0.0
    %151 = vmatpush1.msra.mxu0 0.0
    %152 = vmatprep.subr.mxu0 0.0
    %153 = vmatpush1.msra.mxu0 0.0
    %154 = vmatprep.subr.mxu0 0.0
    %155 = vmatpush1.msra.mxu0 0.0
    %156 = vmatprep.subr.mxu0 0.0
    %157 = vmatpush1.msra.mxu0 0.0
    %158 = vmatprep.subr.mxu0 0.0
    %159 = vmatpush1.msra.mxu0 0.0
    %160 = vmatprep.subr.mxu0 0.0
    %161 = vmatpush1.msra.mxu0 0.0
    %162 = vmatprep.subr.mxu0 0.0
    %163 = vmatpush1.msra.mxu0 0.0
    %164 = vmatprep.subr.mxu0 0.0
    %165 = vmatpush1.msra.mxu0 0.0
    %166 = vmatprep.subr.mxu0 0.0
    %167 = vmatpush1.msra.mxu0 0.0
    %168 = vmatprep.subr.mxu0 0.0
    %169 = vmatpush1.msra.mxu0 0.0
    %170 = vmatprep.subr.mxu0 0.0
    %171 = vmatpush1.msra.mxu0 0.0
    %172 = vmatprep.subr.mxu0 0.0
    %173 = vmatpush1.msra.mxu0 0.0
    %174 = vmatprep.subr.mxu0 0.0
    %175 = vmatpush1.msra.mxu0 0.0
    %176 = vmatprep.subr.mxu0 0.0
    %177 = vmatpush1.msra.mxu0 0.0
    %178 = vmatprep.subr.mxu0 0.0
    %179 = vmatpush1.msra.mxu0 0.0
    %180 = vmatprep.subr.mxu0 0.0
    %181 = vmatpush1.msra.mxu0 0.0
    %182 = vmatprep.subr.mxu0 0.0
    %183 = vmatpush1.msra.mxu0 0.0
    %184 = vmatprep.subr.mxu0 0.0
    %185 = vmatpush1.msra.mxu0 0.0
    %186 = vmatprep.subr.mxu0 0.0
    %187 = vmatpush1.msra.mxu0 0.0
    %188 = vmatprep.subr.mxu0 0.0
    %189 = vmatpush1.msra.mxu0 0.0
    %190 = vmatprep.subr.mxu0 0.0
    %191 = vmatpush1.msra.mxu0 0.0
    %192 = vmatprep.subr.mxu0 0.0
    %193 = vmatpush1.msra.mxu0 0.0
    %194 = vmatprep.subr.mxu0 0.0
    %195 = vmatpush1.msra.mxu0 0.0
    %196 = vmatprep.subr.mxu0 0.0
    %197 = vmatpush1.msra.mxu0 0.0
    %198 = vmatprep.subr.mxu0 0.0
    %199 = vmatpush1.msra.mxu0 0.0
    %200 = vmatprep.subr.mxu0 0.0
    %201 = vmatpush1.msra.mxu0 0.0
    %202 = vmatprep.subr.mxu0 0.0
    %203 = vmatpush1.msra.mxu0 0.0
    %204 = vmatprep.subr.mxu0 0.0
    %205 = vmatpush1.msra.mxu0 0.0
    %206 = vmatprep.mubr.f32.mxu0 0.0
    %207 = vmatmul.mubr.f32.gmra.mrb[0].mxu0 %v60
    %v208 = vpop.f32.mrb[0].mxu0
    %v209 = vadd.f32 0.0, %v208
    %v210 = vpop.f32.mrb[0].mxu0
    %v211 = vadd.f32 0.0, %v210
    %212 = vmatprep.mubr.f32.mxu0 0.0
    %213 = vmatmul.mubr.f32.gmra.mrb[0].mxu0 %v63
    %v214 = vpop.f32.mrb[0].mxu0
    %v215 = vadd.f32 0.0, %v214
    %v216 = vpop.f32.mrb[0].mxu0
    %v217 = vadd.f32 0.0, %v216
    %218 = vdwg.mxu0
    %v219 = vmul.f32 %v132, %v209
    %v220 = vmul.f32 %v138, %v215
    %v221 = vmul.f32 %v134, %v211
    %v222 = vmul.f32 %v140, %v217
    %v223 = vsub.f32 %v219, %v221
    %v224 = vsub.f32 %v220, %v222
    %225 = vst [vmem:[#allocation7] sm:$0xff] %v223
    %226 = vst [vmem:[#allocation7 + $0x10] sm:$0xff] %v224
    %v227 = vadd.f32 %v219, %v221
    %v228 = vadd.f32 %v220, %v222
    %229 = vst [vmem:[#allocation7 + $0x8] sm:$0xff] %v227
    %230 = vst [vmem:[#allocation7 + $0x18] sm:$0xff] %v228
    // Predicated region
    $region18: #{tpu_custom_call.1} parent=1 // pred_check
      _
    $region19: #{tpu_custom_call.1} parent=1 // pred_check_branch
      %232 = sbr.rel (0) target = $region21
    $region20: #{tpu_custom_call.1} parent=1 // pred_region
      %s234 = ssub.s32 512, 512
      %235 = vsyncadd [#allocation4], %s234
      %s236 = sshll.u32 [#allocation7], 4
      %s237 = int_to_ptr.vmem [resolvable:$true] %s236
      %242 = dma.vmem_to_hbm [thread:$0]  %s237, 512, %s2, [#allocation4], 256, 256, 16
    $region21: #{tpu_custom_call.1} parent=1 // pred_fallthru
      _
    // Predicated region
    $region22: #{tpu_custom_call.1} parent=1 // pred_check
      _
    $region23: #{tpu_custom_call.1} parent=1 // pred_check_branch
      %244 = sbr.rel (0) target = $region25
    $region24: #{tpu_custom_call.1} parent=1 // pred_region
      %245 = dma.done [#allocation4], 512
    $region25: #{tpu_custom_call.1} parent=1 // pred_fallthru
      _
    %246 = vsyncpa [#allocation3], 1
    %247 = vsyncpa [#allocation6], 1
    %248 = vsyncpa [#allocation4], 1

</llo_original>
